<compile_context>
chip_gen: v5e
topology: v5e:2x2
jax: 0.10.0
libtpu: 0.0.40
codegen_flags: <defaults>
</compile_context>

<pallas_src>
import jax
import jax.numpy as jnp
from jax import lax
from jax.experimental import pallas as pl
from jax.experimental.pallas import tpu as pltpu


# ----------------------------------------------------------------------------
# Pallas kernels
# ----------------------------------------------------------------------------
def _matmul_bn_relu_kernel(x_ref, w_ref, s_ref, t_ref, o_ref):
    """Stem: relu((x @ w) * s + t)   (conv -> BN -> ReLU, conv bias folded)."""
    y = jnp.dot(x_ref[...], w_ref[...], preferred_element_type=jnp.float32)
    o_ref[...] = jnp.maximum(y * s_ref[...] + t_ref[...], 0.0)


def _bn_relu_matmul_kernel(x_ref, w_ref, s_ref, t_ref, o_ref):
    """Transition: relu(x * s + t) @ w   (BN -> ReLU -> 1x1 conv)."""
    z = jnp.maximum(x_ref[...] * s_ref[...] + t_ref[...], 0.0)
    o_ref[...] = jnp.dot(z, w_ref[...], preferred_element_type=jnp.float32)


def _bottleneck_kernel(x_ref, w_ref, s1_ref, t1_ref, s2_ref, t2_ref, o_ref):
    """DenseLayer bottleneck: relu(bn2(conv1x1(relu(bn1(x))))) fully fused."""
    z = jnp.maximum(x_ref[...] * s1_ref[...] + t1_ref[...], 0.0)
    y = jnp.dot(z, w_ref[...], preferred_element_type=jnp.float32)
    o_ref[...] = jnp.maximum(y * s2_ref[...] + t2_ref[...], 0.0)


def _conv3x3_kernel(x_ref, w_ref, o_ref):
    """3x3 conv (padding already applied) as 9 accumulated MXU matmuls.

    x_ref: (1, H+2, W+2, Cin)   w_ref: (9, Cin, Cout)   o_ref: (1, H, W, Cout)
    """
    hp, wp = x_ref.shape[1], x_ref.shape[2]
    h_out, w_out = hp - 2, wp - 2
    cout = o_ref.shape[3]
    for h in range(h_out):
        acc = jnp.zeros((w_out, cout), jnp.float32)
        for dy in range(3):
            row = x_ref[0, h + dy]                       # (Wp, Cin)
            for dx in range(3):
                acc = acc + jnp.dot(row[dx:dx + w_out, :], w_ref[dy * 3 + dx],
                                    preferred_element_type=jnp.float32)
        o_ref[0, h] = acc


def _head_kernel(x_ref, s_ref, t_ref, wc_ref, bc_ref, o_ref):
    """Final BN -> ReLU -> global average pool -> classifier (per batch)."""
    z = jnp.maximum(x_ref[0] * s_ref[...] + t_ref[...], 0.0)   # (HW, C)
    pooled = jnp.mean(z, axis=0, keepdims=True)                # (1, C)
    o_ref[...] = (jnp.dot(pooled, wc_ref[...],
                          preferred_element_type=jnp.float32) + bc_ref[...])


# ----------------------------------------------------------------------------
# Pallas call wrappers
# ----------------------------------------------------------------------------
def _round_up(x, m):
    return ((x + m - 1) // m) * m


def _row_matmul(kernel, x_rows, w, vecs, cout):
    """Row-tiled fused matmul: grid over 128-row tiles, lane-dense output."""
    r, cin = x_rows.shape
    tile = 128 if r >= 128 else _round_up(r, 8)
    r_pad = _round_up(r, tile)
    if r_pad != r:
        x_rows = jnp.pad(x_rows, ((0, r_pad - r), (0, 0)))

    in_specs = [pl.BlockSpec((tile, cin), lambda i: (i, 0)),
                pl.BlockSpec((cin, cout), lambda i: (0, 0))]
    args = [x_rows, w]
    for v in vecs:
        c = v.shape[-1]
        in_specs.append(pl.BlockSpec((1, c), lambda i: (0, 0)))
        args.append(v.reshape(1, c))

    out = pl.pallas_call(
        kernel,
        out_shape=jax.ShapeDtypeStruct((r_pad, cout), jnp.float32),
        grid_spec=pltpu.PrefetchScalarGridSpec(
            num_scalar_prefetch=0,
            grid=(r_pad // tile,),
            in_specs=in_specs,
            out_specs=pl.BlockSpec((tile, cout), lambda i: (i, 0))),
        compiler_params=pltpu.CompilerParams(
            dimension_semantics=("parallel",)),
    )(*args)
    return out[:r] if r_pad != r else out


def _conv3x3(x_padded, w_flat):
    b, hp, wp, cin = x_padded.shape
    h, w = hp - 2, wp - 2
    cout = w_flat.shape[-1]
    return pl.pallas_call(
        _conv3x3_kernel,
        out_shape=jax.ShapeDtypeStruct((b, h, w, cout), jnp.float32),
        grid_spec=pltpu.PrefetchScalarGridSpec(
            num_scalar_prefetch=0,
            grid=(b,),
            in_specs=[pl.BlockSpec((1, hp, wp, cin), lambda i: (i, 0, 0, 0)),
                      pl.BlockSpec((9, cin, cout), lambda i: (0, 0, 0))],
            out_specs=pl.BlockSpec((1, h, w, cout), lambda i: (i, 0, 0, 0))),
        compiler_params=pltpu.CompilerParams(
            dimension_semantics=("parallel",)),
    )(x_padded, w_flat)


def _head(x_nhwc, head_params):
    b, h, w, c = x_nhwc.shape
    s, t = _fold_bn(head_params['bn'])
    wc = head_params['wc']
    nc = wc.shape[-1]
    return pl.pallas_call(
        _head_kernel,
        out_shape=jax.ShapeDtypeStruct((b, nc), jnp.float32),
        grid_spec=pltpu.PrefetchScalarGridSpec(
            num_scalar_prefetch=0,
            grid=(b,),
            in_specs=[pl.BlockSpec((1, h * w, c), lambda i: (i, 0, 0)),
                      pl.BlockSpec((1, c), lambda i: (0, 0)),
                      pl.BlockSpec((1, c), lambda i: (0, 0)),
                      pl.BlockSpec((c, nc), lambda i: (0, 0)),
                      pl.BlockSpec((1, nc), lambda i: (0, 0))],
            out_specs=pl.BlockSpec((1, nc), lambda i: (i, 0))),
        compiler_params=pltpu.CompilerParams(
            dimension_semantics=("parallel",)),
    )(x_nhwc.reshape(b, h * w, c), s.reshape(1, c), t.reshape(1, c),
      wc, head_params['bc'].reshape(1, nc))


# ----------------------------------------------------------------------------
# Wrapper-side data movement (layout plumbing only)
# ----------------------------------------------------------------------------
def _fold_bn(bn, eps=1e-5):
    s = bn['gamma'] / jnp.sqrt(bn['var'] + eps)
    t = bn['beta'] - bn['mean'] * s
    return s, t


def _extract_patches_7x7_s2(x):
    """x: (B, H, W) single-channel -> (B, H/2, W/2, 49) im2col patches."""
    b, h, w = x.shape
    xp = jnp.pad(x, ((0, 0), (3, 3), (3, 3)))
    ho, wo = h // 2, w // 2
    cols = []
    for dy in range(7):
        for dx in range(7):
            cols.append(xp[:, dy:dy + 2 * ho:2, dx:dx + 2 * wo:2])
    return jnp.stack(cols, axis=-1)


def _maxpool_3x3_s2(x):
    b, h, w, c = x.shape
    xp = jnp.pad(x, ((0, 0), (1, 1), (1, 1), (0, 0)),
                 constant_values=-jnp.inf)
    ho, wo = h // 2, w // 2
    out = jnp.full((b, ho, wo, c), -jnp.inf, x.dtype)
    for dy in range(3):
        for dx in range(3):
            out = jnp.maximum(out, xp[:, dy:dy + 2 * ho:2, dx:dx + 2 * wo:2, :])
    return out


def _avgpool_2x2(x):
    b, h, w, c = x.shape
    return x.reshape(b, h // 2, 2, w // 2, 2, c).mean(axis=(2, 4))


# ----------------------------------------------------------------------------
# Model forward (Pallas path)
# ----------------------------------------------------------------------------
def _dense_block(x, layers):
    for lp in layers:
        b, h, w, cin = x.shape
        s1, t1 = _fold_bn(lp['bn1'])
        s2, t2 = _fold_bn(lp['bn2'])
        cmid = lp['w1'].shape[-1]
        hmid = _row_matmul(_bottleneck_kernel, x.reshape(-1, cin), lp['w1'],
                           [s1, t1, s2, t2], cmid)
        hmid = hmid.reshape(b, h, w, cmid)
        hpad = jnp.pad(hmid, ((0, 0), (1, 1), (1, 1), (0, 0)))
        w2 = lp['w2']
        new = _conv3x3(hpad, w2.reshape(9, w2.shape[2], w2.shape[3]))
        x = jnp.concatenate([x, new], axis=-1)
    return x


def _transition(x, tp):
    b, h, w, cin = x.shape
    s, t = _fold_bn(tp['bn'])
    cout = tp['w'].shape[-1]
    y = _row_matmul(_bn_relu_matmul_kernel, x.reshape(-1, cin), tp['w'],
                    [s, t], cout)
    return _avgpool_2x2(y.reshape(b, h, w, cout))


def birdcnn_v7_forward(x_nchw, params):
    """BirdCNN_v7 inference forward.  x_nchw: (B, 1, H, W) float32."""
    b = x_nchw.shape[0]
    # ---- stem: conv7x7 s2 + bias + BN + ReLU (fused matmul), maxpool ----
    st = params['stem']
    patches = _extract_patches_7x7_s2(x_nchw[:, 0])          # (B, Ho, Wo, 49)
    _, ho, wo, _ = patches.shape
    s, t = _fold_bn(st['bn'])
    t = t + st['b'] * s                                      # fold conv bias
    y = _row_matmul(_matmul_bn_relu_kernel, patches.reshape(-1, 49),
                    st['w'].reshape(49, 64), [s, t], 64)
    x = _maxpool_3x3_s2(y.reshape(b, ho, wo, 64))
    # ---- dense blocks + transitions ----
    for blk in params['blocks']:
        x = _dense_block(x, blk['layers'])
        if blk['trans'] is not None:
            x = _transition(x, blk['trans'])
    # ---- head: BN + ReLU + global pool + (dropout=identity) + classifier ----
    return _head(x, params['head'])


# ----------------------------------------------------------------------------
# Parameter initialization (deterministic, torch-like uniform bounds)
# ----------------------------------------------------------------------------
class _KeyGen:
    def __init__(self, key):
        self._key = key
        self._i = 0

    def __call__(self):
        self._i += 1
        return jax.random.fold_in(self._key, self._i)


def _uniform(key, shape, bound):
    return jax.random.uniform(key, shape, jnp.float32, -bound, bound)


def _init_bn(key, c):
    k1, k2, k3, k4 = jax.random.split(key, 4)
    return {'gamma': jax.random.uniform(k1, (c,), jnp.float32, 0.8, 1.2),
            'beta': jax.random.uniform(k2, (c,), jnp.float32, -0.1, 0.1),
            'mean': jax.random.uniform(k3, (c,), jnp.float32, -0.1, 0.1),
            'var': jax.random.uniform(k4, (c,), jnp.float32, 0.5, 1.5)}


def init_params(key, num_classes, growth=32):
    kg = _KeyGen(key)
    params = {'stem': {
        'w': _uniform(kg(), (7, 7, 1, 64), 1.0 / (49 ** 0.5)),
        'b': _uniform(kg(), (64,), 1.0 / (49 ** 0.5)),
        'bn': _init_bn(kg(), 64)}}
    blocks = []
    c = 64
    for num_layers, trans_out in ((6, 128), (12, 256), (24, 512), (16, None)):
        layers = []
        for i in range(num_layers):
            cin = c + i * growth
            layers.append({
                'bn1': _init_bn(kg(), cin),
                'w1': _uniform(kg(), (cin, 4 * growth), 1.0 / (cin ** 0.5)),
                'bn2': _init_bn(kg(), 4 * growth),
                'w2': _uniform(kg(), (3, 3, 4 * growth, growth),
                               1.0 / ((4 * growth * 9) ** 0.5))})
        c = c + num_layers * growth
        trans = None
        if trans_out is not None:
            trans = {'bn': _init_bn(kg(), c),
                     'w': _uniform(kg(), (c, trans_out), 1.0 / (c ** 0.5))}
            c = trans_out
        blocks.append({'layers': layers, 'trans': trans})
    params['blocks'] = blocks
    params['head'] = {'bn': _init_bn(kg(), c),
                      'wc': _uniform(kg(), (c, num_classes), 1.0 / (c ** 0.5)),
                      'bc': _uniform(kg(), (num_classes,), 1.0 / (c ** 0.5))}
    return params


# ----------------------------------------------------------------------------
# Pure-JAX reference (mirrors the PyTorch forward, eval mode)
# ----------------------------------------------------------------------------
def _bn_ref(x, bn, eps=1e-5):
    return (x - bn['mean']) / jnp.sqrt(bn['var'] + eps) * bn['gamma'] + bn['beta']


def reference_forward(x_nchw, params):
    hp = lax.Precision.HIGHEST
    x = jnp.transpose(x_nchw, (0, 2, 3, 1))
    st = params['stem']
    y = lax.conv_general_dilated(x, st['w'], (2, 2), ((3, 3), (3, 3)),
                                 dimension_numbers=('NHWC', 'HWIO', 'NHWC'),
                                 precision=hp) + st['b']
    y = jnp.maximum(_bn_ref(y, st['bn']), 0.0)
    x = lax.reduce_window(y, -jnp.inf, lax.max, (1, 3, 3, 1), (1, 2, 2, 1),
                          ((0, 0), (1, 1), (1, 1), (0, 0)))
    for blk in params['blocks']:
        for lp in blk['layers']:
            h = jnp.maximum(_bn_ref(x, lp['bn1']), 0.0)
            h = jnp.einsum('bhwc,cd->bhwd', h, lp['w1'], precision=hp)
            h = jnp.maximum(_bn_ref(h, lp['bn2']), 0.0)
            new = lax.conv_general_dilated(h, lp['w2'], (1, 1), ((1, 1), (1, 1)),
                                           dimension_numbers=('NHWC', 'HWIO', 'NHWC'),
                                           precision=hp)
            x = jnp.concatenate([x, new], axis=-1)
        if blk['trans'] is not None:
            tp = blk['trans']
            h = jnp.maximum(_bn_ref(x, tp['bn']), 0.0)
            h = jnp.einsum('bhwc,cd->bhwd', h, tp['w'], precision=hp)
            x = lax.reduce_window(h, 0.0, lax.add, (1, 2, 2, 1), (1, 2, 2, 1),
                                  ((0, 0), (0, 0), (0, 0), (0, 0))) * 0.25
    hd = params['head']
    z = jnp.maximum(_bn_ref(x, hd['bn']), 0.0)
    pooled = jnp.mean(z, axis=(1, 2))
    return jnp.dot(pooled, hd['wc'], precision=hp) + hd['bc']


# ----------------------------------------------------------------------------
if __name__ == "__main__":
    NUM_CLASSES = 10
    B, H, W = 2, 1, 64  # placeholder (overwritten below); keep shapes explicit
    B, CH, H, W = 2, 1, 64, 64

    key = jax.random.PRNGKey(0)
    kx, kp = jax.random.split(key)
    x = jax.random.normal(kx, (B, CH, H, W), jnp.float32)
    params = init_params(kp, NUM_CLASSES)

    logits = birdcnn_v7_forward(x, params)
    logits = jax.block_until_ready(logits)
    assert logits.shape == (B, NUM_CLASSES), logits.shape

    ref = jax.block_until_ready(reference_forward(x, params))
    err = float(jnp.max(jnp.abs(logits - ref)))
    scale = float(jnp.max(jnp.abs(ref)))
    assert err <= 2e-3 * (1.0 + scale), f"max err {err} (ref scale {scale})"

    print("KERNEL_OK")
</pallas_src>

<mosaic_0001>
module attributes {stable_mosaic.version = 11 : i64} {
  func.func @_matmul_bn_relu_kernel(%arg0: i32, %arg1: memref<128x49xf32, #tpu.memory_space<vmem>>, %arg2: memref<49x64xf32, #tpu.memory_space<vmem>>, %arg3: memref<1x64xf32, #tpu.memory_space<vmem>>, %arg4: memref<1x64xf32, #tpu.memory_space<vmem>>, %arg5: memref<128x64xf32, #tpu.memory_space<vmem>>) attributes {dimension_semantics = [#tpu.dimension_semantics<parallel>], iteration_bounds = array<i64: 16>, scalar_prefetch = 0 : i64, scratch_operands = 0 : i64, tpu.core_type = #tpu.core_type<tc>, window_params = [{transform_indices = @transform_0, window_bounds = array<i64: 128, 49>}, {pipeline_mode = #tpu.pipeline_mode<synchronous>, transform_indices = @transform_1, window_bounds = array<i64: 49, 64>}, {pipeline_mode = #tpu.pipeline_mode<synchronous>, transform_indices = @transform_2, window_bounds = array<i64: 1, 64>}, {pipeline_mode = #tpu.pipeline_mode<synchronous>, transform_indices = @transform_3, window_bounds = array<i64: 1, 64>}, {transform_indices = @transform_4, window_bounds = array<i64: 128, 64>}]} {
    %c0 = arith.constant 0 : index
    %c0_0 = arith.constant 0 : index
    %0 = vector.load %arg1[%c0, %c0_0] : memref<128x49xf32, #tpu.memory_space<vmem>>, vector<128x49xf32>
    %c0_1 = arith.constant 0 : index
    %c0_2 = arith.constant 0 : index
    %1 = vector.load %arg2[%c0_1, %c0_2] : memref<49x64xf32, #tpu.memory_space<vmem>>, vector<49x64xf32>
    %cst = arith.constant dense<0.000000e+00> : vector<128x64xf32>
    %2 = tpu.matmul %0, %1, %cst {dimension_numbers = #tpu.dot_dimension_numbers<[1], [0], [0], [1], [0, 0, 1, 1], [], []>} : vector<128x49xf32>, vector<49x64xf32>, vector<128x64xf32> -> vector<128x64xf32>
    %c0_3 = arith.constant 0 : index
    %c0_4 = arith.constant 0 : index
    %3 = vector.load %arg3[%c0_3, %c0_4] : memref<1x64xf32, #tpu.memory_space<vmem>>, vector<1x64xf32>
    %4 = vector.broadcast %3 : vector<1x64xf32> to vector<128x64xf32>
    %5 = arith.mulf %2, %4 : vector<128x64xf32>
    %c0_5 = arith.constant 0 : index
    %c0_6 = arith.constant 0 : index
    %6 = vector.load %arg4[%c0_5, %c0_6] : memref<1x64xf32, #tpu.memory_space<vmem>>, vector<1x64xf32>
    %7 = vector.broadcast %6 : vector<1x64xf32> to vector<128x64xf32>
    %8 = arith.addf %5, %7 : vector<128x64xf32>
    %cst_7 = arith.constant 0.000000e+00 : f32
    %9 = vector.broadcast %cst_7 : f32 to vector<128x64xf32>
    %10 = arith.maximumf %8, %9 : vector<128x64xf32>
    %c0_8 = arith.constant 0 : index
    %c0_9 = arith.constant 0 : index
    %11 = vector.load %arg5[%c0_8, %c0_9] : memref<128x64xf32, #tpu.memory_space<vmem>>, vector<128x64xf32>
    tpu.vector_store %arg5[%c0_8, %c0_9], %10 {strides = array<i32>} : memref<128x64xf32, #tpu.memory_space<vmem>>, vector<128x64xf32>,
    return
  }
  func.func @transform_0(%arg0: i32) -> (i32, i32) {
    %c0_i32 = arith.constant 0 : i32
    %c0_i32_0 = arith.constant 0 : i32
    return %arg0, %c0_i32 : i32, i32
  }
  func.func @transform_1(%arg0: i32) -> (i32, i32) {
    %c0_i32 = arith.constant 0 : i32
    %c0_i32_0 = arith.constant 0 : i32
    %c0_i32_1 = arith.constant 0 : i32
    return %c0_i32, %c0_i32_0 : i32, i32
  }
  func.func @transform_2(%arg0: i32) -> (i32, i32) {
    %c0_i32 = arith.constant 0 : i32
    %c0_i32_0 = arith.constant 0 : i32
    %c0_i32_1 = arith.constant 0 : i32
    return %c0_i32, %c0_i32_0 : i32, i32
  }
  func.func @transform_3(%arg0: i32) -> (i32, i32) {
    %c0_i32 = arith.constant 0 : i32
    %c0_i32_0 = arith.constant 0 : i32
    %c0_i32_1 = arith.constant 0 : i32
    return %c0_i32, %c0_i32_0 : i32, i32
  }
  func.func @transform_4(%arg0: i32) -> (i32, i32) {
    %c0_i32 = arith.constant 0 : i32
    %c0_i32_0 = arith.constant 0 : i32
    return %arg0, %c0_i32 : i32, i32
  }
}

</mosaic_0001>

<llo_original>
// kernel: tpu_custom_call.1
$region0: #{tpu_custom_call.1}
  #allocation0 [shape = 'u32[]', space=smem, size = 0x4, offset = 0x4, fixed_abs, tag = 'smem constant byte address 0x4 - core index']
  #allocation1 [shape = 'u32[72,128]{1,0:T(1,128)}', space=vmem, size = 0x9000, scoped, tag = 'internal scratch']
  %s0 = inlined_call_operand.vmem [shape: f32[2048,49], index: 0, kind: input, shape index: {}]
  %s1 = inlined_call_operand.vmem [shape: f32[49,64], index: 1, kind: input, shape index: {}]
  %s2 = inlined_call_operand.vmem [shape: f32[1,64], index: 2, kind: input, shape index: {}]
  %s3 = inlined_call_operand.vmem [shape: f32[1,64], index: 3, kind: input, shape index: {}]
  %s4 = inlined_call_operand.vmem [shape: f32[2048,64], index: 4, kind: output, shape index: {}]
  %s5 = sld [smem:[#allocation0]]
  $region49: #{tpu_custom_call.1} parent=0
    _
  %s7 = ssub.s32 1, %s5
  %s8 = scalar_select 0, %s7, %s5
  loop: start=0, step=1, limit=18
  $region2: #{tpu_custom_call.1} parent=0 // loop_pre_header
    _
  $region3: #{tpu_custom_call.1} parent=0 // loop_header
    %s10 = sphi 0, %s14
    %p11 = scmp.ge.s32.totalorder %s10, 18
    %s20 = sphi 0, %s22
    %s23 = sphi 0, %s20
    %s24 = sphi 0, %s23
    %s40 = sphi 0, %s24
    %s44 = sphi 0, %s44
    %s46 = sphi 0, %s44
    %s47 = sphi 0, %s46
    %s61 = sphi 0, %s47
    %s65 = sphi 0, %s65
    %s67 = sphi 0, %s65
    %s68 = sphi 0, %s67
    %s82 = sphi 0, %s68
    %s86 = sphi 0, %s86
    %s88 = sphi 0, %s86
    %s89 = sphi 0, %s88
    %s103 = sphi 0, %s89
    %s109 = sphi 0, %s111
    %s112 = sphi 0, %s109
    %s113 = sphi 0, %s112
    %s129 = sphi 0, %s113
  $region4: #{tpu_custom_call.1} parent=0 // loop_header_branch
    %13 = sbr.rel (%p11) target = $region8
  $region5: #{tpu_custom_call.1} parent=0 // loop_body
    %s15 = ssub.s32 %s10, 1
    %s16 = ssub.s32 %s10, 2
    %s17 = sadd.s32 %s10, 1
    %s18 = ssub.s32 %s10, %s17
    %p19 = scmp.eq.s32.totalorder %s18, 0
    %s21 = sadd.s32 %s20, 1
    %s22 = scalar_select %p19, %s20, %s21
    %p25 = pneg %p19
    %p26 = scmp.eq.s32.totalorder %s10, 15
    %p27 = por %p25, %p26
    %p28 = scmp.ne.s32.totalorder %s20, %s23
    %p29 = scmp.eq.s32.totalorder %s10, 0
    %p30 = por %p28, %p29
    %p31 = scmp.ne.s32.totalorder %s20, %s23
    %p32 = scmp.eq.s32.totalorder %s15, 15
    %p33 = por %p31, %p32
    %p34 = scmp.ne.s32.totalorder %s23, %s24
    %p35 = scmp.eq.s32.totalorder %s15, 0
    %p36 = por %p34, %p35
    %p37 = scmp.ne.s32.totalorder %s23, %s24
    %p38 = scmp.eq.s32.totalorder %s16, 15
    %p39 = por %p37, %p38
    %p41 = scmp.ne.s32.totalorder %s24, %s40
    %p42 = scmp.eq.s32.totalorder %s16, 0
    %p43 = por %p41, %p42
    %s45 = sadd.s32 %s44, 1
    %p48 = scmp.eq.s32.totalorder %s10, 15
    %p49 = scmp.ne.s32.totalorder %s44, %s46
    %p50 = scmp.eq.s32.totalorder %s10, 0
    %p51 = por %p49, %p50
    %p52 = scmp.ne.s32.totalorder %s44, %s46
    %p53 = scmp.eq.s32.totalorder %s15, 15
    %p54 = por %p52, %p53
    %p55 = scmp.ne.s32.totalorder %s46, %s47
    %p56 = scmp.eq.s32.totalorder %s15, 0
    %p57 = por %p55, %p56
    %p58 = scmp.ne.s32.totalorder %s46, %s47
    %p59 = scmp.eq.s32.totalorder %s16, 15
    %p60 = por %p58, %p59
    %p62 = scmp.ne.s32.totalorder %s47, %s61
    %p63 = scmp.eq.s32.totalorder %s16, 0
    %p64 = por %p62, %p63
    %s66 = sadd.s32 %s65, 1
    %p69 = scmp.eq.s32.totalorder %s10, 15
    %p70 = scmp.ne.s32.totalorder %s65, %s67
    %p71 = scmp.eq.s32.totalorder %s10, 0
    %p72 = por %p70, %p71
    %p73 = scmp.ne.s32.totalorder %s65, %s67
    %p74 = scmp.eq.s32.totalorder %s15, 15
    %p75 = por %p73, %p74
    %p76 = scmp.ne.s32.totalorder %s67, %s68
    %p77 = scmp.eq.s32.totalorder %s15, 0
    %p78 = por %p76, %p77
    %p79 = scmp.ne.s32.totalorder %s67, %s68
    %p80 = scmp.eq.s32.totalorder %s16, 15
    %p81 = por %p79, %p80
    %p83 = scmp.ne.s32.totalorder %s68, %s82
    %p84 = scmp.eq.s32.totalorder %s16, 0
    %p85 = por %p83, %p84
    %s87 = sadd.s32 %s86, 1
    %p90 = scmp.eq.s32.totalorder %s10, 15
    %p91 = scmp.ne.s32.totalorder %s86, %s88
    %p92 = scmp.eq.s32.totalorder %s10, 0
    %p93 = por %p91, %p92
    %p94 = scmp.ne.s32.totalorder %s86, %s88
    %p95 = scmp.eq.s32.totalorder %s15, 15
    %p96 = por %p94, %p95
    %p97 = scmp.ne.s32.totalorder %s88, %s89
    %p98 = scmp.eq.s32.totalorder %s15, 0
    %p99 = por %p97, %p98
    %p100 = scmp.ne.s32.totalorder %s88, %s89
    %p101 = scmp.eq.s32.totalorder %s16, 15
    %p102 = por %p100, %p101
    %p104 = scmp.ne.s32.totalorder %s89, %s103
    %p105 = scmp.eq.s32.totalorder %s16, 0
    %p106 = por %p104, %p105
    %s107 = ssub.s32 %s10, %s17
    %p108 = scmp.eq.s32.totalorder %s107, 0
    %s110 = sadd.s32 %s109, 1
    %s111 = scalar_select %p108, %s109, %s110
    %p114 = pneg %p108
    %p115 = scmp.eq.s32.totalorder %s10, 15
    %p116 = por %p114, %p115
    %p117 = scmp.ne.s32.totalorder %s109, %s112
    %p118 = scmp.eq.s32.totalorder %s10, 0
    %p119 = por %p117, %p118
    %p120 = scmp.ne.s32.totalorder %s109, %s112
    %p121 = scmp.eq.s32.totalorder %s15, 15
    %p122 = por %p120, %p121
    %p123 = scmp.ne.s32.totalorder %s112, %s113
    %p124 = scmp.eq.s32.totalorder %s15, 0
    %p125 = por %p123, %p124
    %p126 = scmp.ne.s32.totalorder %s112, %s113
    %p127 = scmp.eq.s32.totalorder %s16, 15
    %p128 = por %p126, %p127
    %p130 = scmp.ne.s32.totalorder %s113, %s129
    %p131 = scmp.eq.s32.totalorder %s16, 0
    %p132 = por %p130, %p131
    %p133 = scmp.le.s32.totalorder 1, %s10
    %p134 = scmp.lt.s32.totalorder %s10, 17
    %p135 = pnand %p133, %p134
    %p136 = pneg %p135
    // Predicated region
    $region9: #{tpu_custom_call.1} parent=5 // pred_check
      _
    $region10: #{tpu_custom_call.1} parent=5 // pred_check_branch
      %138 = sbr.rel (%p135) target = $region12
    $region11: #{tpu_custom_call.1} parent=5 // pred_region
      %s139 = ssub.s32 %s10, 1
      // Predicated region
      $region13: #{tpu_custom_call.1} parent=11 // pred_check
        %p140 = pneg %p57
      $region14: #{tpu_custom_call.1} parent=11 // pred_check_branch
        %142 = sbr.rel (%p140) target = $region16
      $region15: #{tpu_custom_call.1} parent=11 // pred_region
        _
      $region16: #{tpu_custom_call.1} parent=11 // pred_fallthru
        _
      // Predicated region
      $region17: #{tpu_custom_call.1} parent=11 // pred_check
        %p143 = pneg %p78
      $region18: #{tpu_custom_call.1} parent=11 // pred_check_branch
        %145 = sbr.rel (%p143) target = $region20
      $region19: #{tpu_custom_call.1} parent=11 // pred_region
        _
      $region20: #{tpu_custom_call.1} parent=11 // pred_fallthru
        _
      // Predicated region
      $region21: #{tpu_custom_call.1} parent=11 // pred_check
        %p146 = pneg %p99
      $region22: #{tpu_custom_call.1} parent=11 // pred_check_branch
        %148 = sbr.rel (%p146) target = $region24
      $region23: #{tpu_custom_call.1} parent=11 // pred_region
        _
      $region24: #{tpu_custom_call.1} parent=11 // pred_fallthru
        _
    $region12: #{tpu_custom_call.1} parent=5 // pred_fallthru
      _
    %p149 = scmp.lt.s32.totalorder %s10, 16
    // Predicated region
    $region25: #{tpu_custom_call.1} parent=5 // pred_check
      %p150 = pneg %p149
    $region26: #{tpu_custom_call.1} parent=5 // pred_check_branch
      %152 = sbr.rel (%p150) target = $region28
    $region27: #{tpu_custom_call.1} parent=5 // pred_region
      // Predicated region
      $region29: #{tpu_custom_call.1} parent=27 // pred_check
        %p153 = pneg %p30
      $region30: #{tpu_custom_call.1} parent=27 // pred_check_branch
        %155 = sbr.rel (%p153) target = $region32
      $region31: #{tpu_custom_call.1} parent=27 // pred_region
        %s156 = smul.u32 16, %s10
        %p157 = scmp.lt.s32.totalorder %s156, 255
        %s158 = scalar_select %p157, %s156, 255
        %s159 = smul.addr %s158, 8
        %s160 = scalar_lea.vmem %s0, %s159
        %s161 = smul.u32 16, %s10
      $region32: #{tpu_custom_call.1} parent=27 // pred_fallthru
        _
    $region28: #{tpu_custom_call.1} parent=5 // pred_fallthru
      _
    %p162 = scmp.le.s32.totalorder 1, %s10
    %p163 = scmp.lt.s32.totalorder %s10, 17
    %p164 = pnand %p162, %p163
    %p165 = pneg %p164
    // Predicated region
    $region33: #{tpu_custom_call.1} parent=5 // pred_check
      _
    $region34: #{tpu_custom_call.1} parent=5 // pred_check_branch
      %167 = sbr.rel (%p164) target = $region36
    $region35: #{tpu_custom_call.1} parent=5 // pred_region
      %s168 = ssub.s32 %s10, 1
      %s169 = smul.u32 16, %s15
      %p170 = scmp.lt.s32.totalorder %s169, 255
      %s171 = scalar_select %p170, %s169, 255
      %s172 = smul.addr %s171, 8
      %s173 = scalar_lea.vmem %s0, %s172
      %p174 = pneg %p36
      %p175 = pneg %p33
      %p176 = pneg %p57
      %p177 = pneg %p54
      %p178 = pneg %p78
      %p179 = pneg %p75
      %p180 = pneg %p99
      %p181 = pneg %p96
      %p182 = pneg %p125
      %p183 = pneg %p122
      %s184 = smul.u32 16, %s15
      %p185 = scmp.lt.s32.totalorder %s184, 255
      %s186 = scalar_select %p185, %s184, 255
      %s187 = smul.addr %s186, 8
      %s188 = scalar_lea.vmem %s4, %s187
      %s189 = smul.u32 16, %s15
      %p190 = scmp.lt.s32.totalorder %s189, 255
      %s191 = scalar_select %p190, %s189, 255
      %s192 = smul.addr %s191, 8
      %s193 = scalar_lea.vmem %s0, %s192
      %s194 = smul.u32 16, %s15
      %s195 = smul.u32 16, %s15
      %p196 = scmp.lt.s32.totalorder %s195, 255
      %s197 = scalar_select %p196, %s195, 255
      %s198 = smul.addr %s197, 8
      %s199 = scalar_lea.vmem %s4, %s198
      %s200 = smul.u32 16, %s15
      %v201 = vld [vmem:[%s193] sm:$0xff]
      %v202 = vld [vmem:[%s193 + $0x8] sm:$0xff]
      %v203 = vld [vmem:[%s193 + $0x10] sm:$0xff]
      %v204 = vld [vmem:[%s193 + $0x18] sm:$0xff]
      %v205 = vld [vmem:[%s193 + $0x20] sm:$0xff]
      %v206 = vld [vmem:[%s193 + $0x28] sm:$0xff]
      %v207 = vld [vmem:[%s193 + $0x30] sm:$0xff]
      %v208 = vld [vmem:[%s193 + $0x38] sm:$0xff]
      %v209 = vld [vmem:[%s193 + $0x40] sm:$0xff]
      %v210 = vld [vmem:[%s193 + $0x48] sm:$0xff]
      %v211 = vld [vmem:[%s193 + $0x50] sm:$0xff]
      %v212 = vld [vmem:[%s193 + $0x58] sm:$0xff]
      %v213 = vld [vmem:[%s193 + $0x60] sm:$0xff]
      %v214 = vld [vmem:[%s193 + $0x68] sm:$0xff]
      %v215 = vld [vmem:[%s193 + $0x70] sm:$0xff]
      %v216 = vld [vmem:[%s193 + $0x78] sm:$0xff]
      %v217 = vld [vmem:[%s1] sm:$0xff]
      %v218 = vld [vmem:[%s1 + $0x8] sm:$0xff]
      %v219 = vld [vmem:[%s1 + $0x10] sm:$0xff]
      %v220 = vld [vmem:[%s1 + $0x18] sm:$0xff]
      %v221 = vld [vmem:[%s1 + $0x20] sm:$0xff]
      %v222 = vld [vmem:[%s1 + $0x28] sm:$0xff]
      %v223 = vld [vmem:[%s1 + $0x30] sm:$0x1]
      %vm224 = vcmask 400384
      %v226 = vsel %vm224, %v201, 0
      %v229 = vsel %vm224, %v202, 0
      %v232 = vsel %vm224, %v203, 0
      %v235 = vsel %vm224, %v204, 0
      %v238 = vsel %vm224, %v205, 0
      %v241 = vsel %vm224, %v206, 0
      %v244 = vsel %vm224, %v207, 0
      %v247 = vsel %vm224, %v208, 0
      %v250 = vsel %vm224, %v209, 0
      %v253 = vsel %vm224, %v210, 0
      %v256 = vsel %vm224, %v211, 0
      %v259 = vsel %vm224, %v212, 0
      %v262 = vsel %vm224, %v213, 0
      %v265 = vsel %vm224, %v214, 0
      %v268 = vsel %vm224, %v215, 0
      %v271 = vsel %vm224, %v216, 0
      %vm273 = vcmask 1040384
      %v275 = vsel %vm273, %v223, 0
      %277 = vmatpush.msra.mxu0 0.0
      %278 = vmatpush.msra.mxu0 0.0
      %279 = vmatpush.msra.mxu0 0.0
      %280 = vmatpush.msra.mxu0 0.0
      %281 = vmatpush.msra.mxu0 0.0
      %282 = vmatpush.msra.mxu0 0.0
      %283 = vmatpush.msra.mxu0 0.0
      %284 = vmatpush.msra.mxu0 0.0
      %285 = vmatpush.msra.mxu0 0.0
      %286 = vmatpush.msra.mxu0 %v275
      %287 = vmatpush.msra.mxu0 %v222
      %288 = vmatpush.msra.mxu0 %v221
      %289 = vmatpush.msra.mxu0 %v220
      %290 = vmatpush.msra.mxu0 %v219
      %291 = vmatpush.msra.mxu0 %v218
      %292 = vmatpush.msra.mxu0 %v217
      %293 = vmatmul.f32.gmra.mxu0 %v226
      %v294 = vpop.f32.mrf.mxu0
      %v295 = vadd.f32 0.0, %v294
      %296 = vmatmul.f32.gmra.mxu0 %v229
      %v297 = vpop.f32.mrf.mxu0
      %v298 = vadd.f32 0.0, %v297
      %299 = vmatmul.f32.gmra.mxu0 %v232
      %v300 = vpop.f32.mrf.mxu0
      %v301 = vadd.f32 0.0, %v300
      %302 = vmatmul.f32.gmra.mxu0 %v235
      %v303 = vpop.f32.mrf.mxu0
      %v304 = vadd.f32 0.0, %v303
      %305 = vmatmul.f32.gmra.mxu0 %v238
      %v306 = vpop.f32.mrf.mxu0
      %v307 = vadd.f32 0.0, %v306
      %308 = vmatmul.f32.gmra.mxu0 %v241
      %v309 = vpop.f32.mrf.mxu0
      %v310 = vadd.f32 0.0, %v309
      %311 = vmatmul.f32.gmra.mxu0 %v244
      %v312 = vpop.f32.mrf.mxu0
      %v313 = vadd.f32 0.0, %v312
      %314 = vmatmul.f32.gmra.mxu0 %v247
      %v315 = vpop.f32.mrf.mxu0
      %v316 = vadd.f32 0.0, %v315
      %317 = vmatmul.f32.gmra.mxu0 %v250
      %v318 = vpop.f32.mrf.mxu0
      %v319 = vadd.f32 0.0, %v318
      %320 = vmatmul.f32.gmra.mxu0 %v253
      %v321 = vpop.f32.mrf.mxu0
      %v322 = vadd.f32 0.0, %v321
      %323 = vmatmul.f32.gmra.mxu0 %v256
      %v324 = vpop.f32.mrf.mxu0
      %v325 = vadd.f32 0.0, %v324
      %326 = vmatmul.f32.gmra.mxu0 %v259
      %v327 = vpop.f32.mrf.mxu0
      %v328 = vadd.f32 0.0, %v327
      %329 = vmatmul.f32.gmra.mxu0 %v262
      %v330 = vpop.f32.mrf.mxu0
      %v331 = vadd.f32 0.0, %v330
      %332 = vmatmul.f32.gmra.mxu0 %v265
      %v333 = vpop.f32.mrf.mxu0
      %v334 = vadd.f32 0.0, %v333
      %335 = vmatmul.f32.gmra.mxu0 %v268
      %v336 = vpop.f32.mrf.mxu0
      %v337 = vadd.f32 0.0, %v336
      %338 = vmatmul.f32.gmra.mxu0 %v271
      %v339 = vpop.f32.mrf.mxu0
      %v340 = vadd.f32 0.0, %v339
      %341 = vdwg.mxu0
      %v342 = vld [vmem:[%s2] sm:$0x1]
      %v344 = vperm.slane %v342, 0
      %v346 = vmul.f32 %v295, %v344
      %v347 = vmul.f32 %v298, %v344
      %v348 = vmul.f32 %v301, %v344
      %v349 = vmul.f32 %v304, %v344
      %v350 = vmul.f32 %v307, %v344
      %v351 = vmul.f32 %v310, %v344
      %v352 = vmul.f32 %v313, %v344
      %v353 = vmul.f32 %v316, %v344
      %v354 = vmul.f32 %v319, %v344
      %v355 = vmul.f32 %v322, %v344
      %v356 = vmul.f32 %v325, %v344
      %v357 = vmul.f32 %v328, %v344
      %v358 = vmul.f32 %v331, %v344
      %v359 = vmul.f32 %v334, %v344
      %v360 = vmul.f32 %v337, %v344
      %v361 = vmul.f32 %v340, %v344
      %v362 = vld [vmem:[%s3] sm:$0x1]
      %v364 = vperm.slane %v362, 0
      %v366 = vadd.f32 %v346, %v364
      %v367 = vadd.f32 %v347, %v364
      %v368 = vadd.f32 %v348, %v364
      %v369 = vadd.f32 %v349, %v364
      %v370 = vadd.f32 %v350, %v364
      %v371 = vadd.f32 %v351, %v364
      %v372 = vadd.f32 %v352, %v364
      %v373 = vadd.f32 %v353, %v364
      %v374 = vadd.f32 %v354, %v364
      %v375 = vadd.f32 %v355, %v364
      %v376 = vadd.f32 %v356, %v364
      %v377 = vadd.f32 %v357, %v364
      %v378 = vadd.f32 %v358, %v364
      %v379 = vadd.f32 %v359, %v364
      %v380 = vadd.f32 %v360, %v364
      %v381 = vadd.f32 %v361, %v364
      %v382 = vmax.f32 %v366, 0.0
      %v383 = vmax.f32 %v367, 0.0
      %v384 = vmax.f32 %v368, 0.0
      %v385 = vmax.f32 %v369, 0.0
      %v386 = vmax.f32 %v370, 0.0
      %v387 = vmax.f32 %v371, 0.0
      %v388 = vmax.f32 %v372, 0.0
      %v389 = vmax.f32 %v373, 0.0
      %v390 = vmax.f32 %v374, 0.0
      %v391 = vmax.f32 %v375, 0.0
      %v392 = vmax.f32 %v376, 0.0
      %v393 = vmax.f32 %v377, 0.0
      %v394 = vmax.f32 %v378, 0.0
      %v395 = vmax.f32 %v379, 0.0
      %v396 = vmax.f32 %v380, 0.0
      %v397 = vmax.f32 %v381, 0.0
      %vm398 = vcmask 523264
      %399 = vst.msk [vmem:[%s199] sm:$0xff] %vm398, %v382
      %400 = vst.msk [vmem:[%s199 + $0x8] sm:$0xff] %vm398, %v383
      %401 = vst.msk [vmem:[%s199 + $0x10] sm:$0xff] %vm398, %v384
      %402 = vst.msk [vmem:[%s199 + $0x18] sm:$0xff] %vm398, %v385
      %403 = vst.msk [vmem:[%s199 + $0x20] sm:$0xff] %vm398, %v386
      %404 = vst.msk [vmem:[%s199 + $0x28] sm:$0xff] %vm398, %v387
      %405 = vst.msk [vmem:[%s199 + $0x30] sm:$0xff] %vm398, %v388
      %406 = vst.msk [vmem:[%s199 + $0x38] sm:$0xff] %vm398, %v389
      %407 = vst.msk [vmem:[%s199 + $0x40] sm:$0xff] %vm398, %v390
      %408 = vst.msk [vmem:[%s199 + $0x48] sm:$0xff] %vm398, %v391
      %409 = vst.msk [vmem:[%s199 + $0x50] sm:$0xff] %vm398, %v392
      %410 = vst.msk [vmem:[%s199 + $0x58] sm:$0xff] %vm398, %v393
      %411 = vst.msk [vmem:[%s199 + $0x60] sm:$0xff] %vm398, %v394
      %412 = vst.msk [vmem:[%s199 + $0x68] sm:$0xff] %vm398, %v395
      %413 = vst.msk [vmem:[%s199 + $0x70] sm:$0xff] %vm398, %v396
      %414 = vst.msk [vmem:[%s199 + $0x78] sm:$0xff] %vm398, %v397
      %s415 = smul.u32 16, %s15
      %p416 = scmp.lt.s32.totalorder %s415, 255
      %s417 = scalar_select %p416, %s415, 255
      %s418 = smul.addr %s417, 8
      %s419 = scalar_lea.vmem %s4, %s418
      // Predicated region
      $region37: #{tpu_custom_call.1} parent=35 // pred_check
        %p420 = pneg %p122
      $region38: #{tpu_custom_call.1} parent=35 // pred_check_branch
        %422 = sbr.rel (%p420) target = $region40
      $region39: #{tpu_custom_call.1} parent=35 // pred_region
        %s423 = smul.u32 16, %s15
      $region40: #{tpu_custom_call.1} parent=35 // pred_fallthru
        _
    $region36: #{tpu_custom_call.1} parent=5 // pred_fallthru
      _
    %p424 = scmp.le.s32.totalorder 2, %s10
    // Predicated region
    $region41: #{tpu_custom_call.1} parent=5 // pred_check
      %p425 = pneg %p424
    $region42: #{tpu_custom_call.1} parent=5 // pred_check_branch
      %427 = sbr.rel (%p425) target = $region44
    $region43: #{tpu_custom_call.1} parent=5 // pred_region
      %s428 = ssub.s32 %s10, 2
      // Predicated region
      $region45: #{tpu_custom_call.1} parent=43 // pred_check
        %p429 = pneg %p128
      $region46: #{tpu_custom_call.1} parent=43 // pred_check_branch
        %431 = sbr.rel (%p429) target = $region48
      $region47: #{tpu_custom_call.1} parent=43 // pred_region
        %s432 = smul.u32 16, %s16
        %p433 = scmp.lt.s32.totalorder %s432, 255
        %s434 = scalar_select %p433, %s432, 255
        %s435 = smul.addr %s434, 8
        %s436 = scalar_lea.vmem %s4, %s435
      $region48: #{tpu_custom_call.1} parent=43 // pred_fallthru
        _
    $region44: #{tpu_custom_call.1} parent=5 // pred_fallthru
      _
  $region6: #{tpu_custom_call.1} parent=0 // loop_footer
    %s14 = sadd.s32 1, %s10
  $region7: #{tpu_custom_call.1} parent=0 // loop_footer_branch
    %9 = sbr.rel target = $region3
  $region8: #{tpu_custom_call.1} parent=0 // loop_exit
    _

</llo_original>
